<compile_context>
chip_gen: v7x
topology: tpu7x:2x2x1
jax: 0.10.0
libtpu: 0.0.40
codegen_flags: <defaults>
</compile_context>

<pallas_src>
import functools

import jax
import jax.numpy as jnp
from jax.experimental import pallas as pl
from jax.experimental.pallas import tpu as pltpu

_LANES = 128


def _make_entailment_kernel(block_rows: int, num_tiles: int, valid_in_last: int):
    tile_elems = block_rows * _LANES
    need_mask = valid_in_last < tile_elems   # static: does the last tile contain padding?

    def kernel(logits_ref, labels_ref, psum_ref, pred_ref):
        # logits_ref: [3, block_rows, 128] (native dtype)
        # labels_ref: [block_rows, 128] int32
        # psum_ref:   [1, 128] f32   (per-tile, per-lane partial sums)
        # pred_ref:   [block_rows, 128] int32
        x0 = jnp.clip(logits_ref[0].astype(jnp.float32), -100.0, 100.0)
        x1 = jnp.clip(logits_ref[1].astype(jnp.float32), -100.0, 100.0)
        x2 = jnp.clip(logits_ref[2].astype(jnp.float32), -100.0, 100.0)

        # Numerically-stable 3-way logsumexp with only 2 exps: exp(max - max) == 1.
        m = jnp.maximum(jnp.maximum(x0, x1), x2)
        mn = jnp.minimum(jnp.minimum(x0, x1), x2)
        med = (x0 + x1 + x2) - m - mn
        lse = m + jnp.log(1.0 + jnp.exp(med - m) + jnp.exp(mn - m))

        # labels {-1,0,1} -> class indices {0,1,2}; pick the target-class logit.
        lbl = labels_ref[...] + 1
        picked = jnp.where(lbl == 0, x0, jnp.where(lbl == 1, x1, x2))
        per_ex = lse - picked                                    # [block_rows, 128]

        # argmax over the 3 classes (first-max-wins, matches torch), back to {-1,0,1}.
        pred_ref[...] = (
            jnp.where((x0 >= x1) & (x0 >= x2), 0,
                      jnp.where(x1 >= x2, 1, 2)).astype(jnp.int32) - 1
        )

        if need_mask:
            pid = pl.program_id(0)
            last = num_tiles - 1

            @pl.when(pid == last)
            def _():
                row = jax.lax.broadcasted_iota(jnp.int32, per_ex.shape, 0)
                lane = jax.lax.broadcasted_iota(jnp.int32, per_ex.shape, 1)
                masked = jnp.where(row * _LANES + lane < valid_in_last, per_ex, 0.0)
                psum_ref[...] = jnp.sum(masked, axis=0, keepdims=True)

            @pl.when(pid != last)
            def _():
                psum_ref[...] = jnp.sum(per_ex, axis=0, keepdims=True)
        else:
            psum_ref[...] = jnp.sum(per_ex, axis=0, keepdims=True)

    return kernel


@functools.partial(jax.jit, static_argnames=("block_rows",))
def entailment_loss(logits, labels, block_rows=None):
    """logits: [B, 3] float (any float dtype), labels: [B] int in {-1, 0, 1}.
    Returns (clipped_loss scalar f32, predictions [B] int32, metrics dict)."""
    B, C = logits.shape
    assert C == 3, "EntailmentLoss expects 3 classes"

    rows = -(-B // _LANES)                       # ceil(B / 128)
    if block_rows is None:
        block_rows = rows if rows <= 64 else 64  # up to 8192 batch elements / tile
    block_rows = max(1, min(block_rows, rows))
    num_tiles = -(-rows // block_rows)
    rows_pad = num_tiles * block_rows
    b_pad = rows_pad * _LANES
    valid_in_last = B - (num_tiles - 1) * block_rows * _LANES

    # class-major, lane-dense layout: [3, rows_pad, 128]; the reshape from the
    # transposed [3, b_pad] is contiguous (free).
    logits_cm = jnp.transpose(logits)
    labels_i = labels.astype(jnp.int32)
    if b_pad != B:
        logits_cm = jnp.pad(logits_cm, ((0, 0), (0, b_pad - B)))
        labels_i = jnp.pad(labels_i, (0, b_pad - B))
    logits_cm = logits_cm.reshape(3, rows_pad, _LANES)
    labels_cm = labels_i.reshape(rows_pad, _LANES)

    kernel = _make_entailment_kernel(block_rows, num_tiles, valid_in_last)

    bytes_accessed = (3 * b_pad * logits.dtype.itemsize   # logits in
                      + b_pad * 4                          # labels in
                      + b_pad * 4                           # preds out
                      + num_tiles * _LANES * 4)             # partial sums out
    cost = pl.CostEstimate(flops=30 * b_pad,
                           transcendentals=3 * b_pad,
                           bytes_accessed=bytes_accessed)

    psums, pred = pl.pallas_call(
        kernel,
        grid=(num_tiles,),
        in_specs=[
            pl.BlockSpec((3, block_rows, _LANES), lambda i: (0, i, 0)),
            pl.BlockSpec((block_rows, _LANES), lambda i: (i, 0)),
        ],
        out_specs=(
            pl.BlockSpec((1, _LANES), lambda i: (i, 0)),
            pl.BlockSpec((block_rows, _LANES), lambda i: (i, 0)),
        ),
        out_shape=(
            jax.ShapeDtypeStruct((num_tiles, _LANES), jnp.float32),
            jax.ShapeDtypeStruct((rows_pad, _LANES), jnp.int32),
        ),
        compiler_params=pltpu.CompilerParams(dimension_semantics=("parallel",)),
        cost_estimate=cost,
    )(logits_cm, labels_cm)

    mean_loss = jnp.sum(psums) / jnp.float32(B)
    clipped_loss = jnp.clip(mean_loss, -10.0, 10.0)
    predictions = pred.reshape(-1)[:B]

    # TODO(synk): TreeMatchingMetrics.compute_task_metrics is not defined in the
    # provided source; only a basic accuracy metric is computed here (plain-JAX glue).
    metrics = {
        "accuracy": jnp.mean((predictions == labels.astype(jnp.int32)).astype(jnp.float32))
    }
    return clipped_loss, predictions, metrics


def _reference(logits, labels):
    """Pure-JAX reference matching the PyTorch forward."""
    x = jnp.clip(logits.astype(jnp.float32), -100.0, 100.0)
    lbl = labels.astype(jnp.int32) + 1
    logp = jax.nn.log_softmax(x, axis=-1)
    loss = -jnp.mean(jnp.take_along_axis(logp, lbl[:, None], axis=1))
    loss = jnp.clip(loss, -10.0, 10.0)
    pred = jnp.argmax(x, axis=1).astype(jnp.int32) - 1
    return loss, pred


if __name__ == "__main__":
    key = jax.random.PRNGKey(0)
    k1, k2 = jax.random.split(key)

    # Small shapes consistent with the module: batch=8, 3 classes.
    B = 8
    logits = jax.random.normal(k1, (B, 3), dtype=jnp.float32) * 5.0
    labels = jax.random.randint(k2, (B,), -1, 2, dtype=jnp.int32)  # values in {-1,0,1}

    loss, predictions, metrics = entailment_loss(logits, labels)
    jax.block_until_ready((loss, predictions, metrics))

    ref_loss, ref_pred = _reference(logits, labels)
    assert jnp.allclose(loss, ref_loss, atol=1e-5), (loss, ref_loss)
    assert jnp.array_equal(predictions, ref_pred), (predictions, ref_pred)

    # Second check: exercise the multi-tile grid + last-tile masking path.
    k3, k4 = jax.random.split(k2)
    B2 = 2000
    logits2 = jax.random.normal(k3, (B2, 3), dtype=jnp.float32) * 5.0
    labels2 = jax.random.randint(k4, (B2,), -1, 2, dtype=jnp.int32)
    loss2, pred2, _ = entailment_loss(logits2, labels2, block_rows=8)
    jax.block_until_ready((loss2, pred2))
    ref_loss2, ref_pred2 = _reference(logits2, labels2)
    assert jnp.allclose(loss2, ref_loss2, atol=1e-5), (loss2, ref_loss2)
    assert jnp.array_equal(pred2, ref_pred2), (pred2, ref_pred2)

    print("KERNEL_OK")
</pallas_src>

<mosaic_0001>
module attributes {stable_mosaic.version = 11 : i64} {
  func.func @kernel(%arg0: i32, %arg1: memref<3x1x128xf32, #tpu.memory_space<vmem>>, %arg2: memref<1x128xi32, #tpu.memory_space<vmem>>, %arg3: memref<1x128xf32, #tpu.memory_space<vmem>>, %arg4: memref<1x128xi32, #tpu.memory_space<vmem>>) attributes {dimension_semantics = [#tpu.dimension_semantics<parallel>], iteration_bounds = array<i64: 1>, scalar_prefetch = 0 : i64, scratch_operands = 0 : i64, tpu.core_type = #tpu.core_type<tc>, window_params = [{transform_indices = @transform_0, window_bounds = array<i64: 3, 1, 128>}, {transform_indices = @transform_1, window_bounds = array<i64: 1, 128>}, {transform_indices = @transform_2, window_bounds = array<i64: 1, 128>}, {transform_indices = @transform_3, window_bounds = array<i64: 1, 128>}]} {
    %c0 = arith.constant 0 : index
    %c0_0 = arith.constant 0 : index
    %c0_1 = arith.constant 0 : index
    %0 = vector.load %arg1[%c0, %c0_0, %c0_1] : memref<3x1x128xf32, #tpu.memory_space<vmem>>, vector<1x1x128xf32>
    %1 = vector.shape_cast %0 : vector<1x1x128xf32> to vector<1x128xf32>
    %cst = arith.constant -1.000000e+02 : f32
    %cst_2 = arith.constant 1.000000e+02 : f32
    %2 = vector.broadcast %cst : f32 to vector<1x128xf32>
    %3 = arith.maximumf %2, %1 : vector<1x128xf32>
    %4 = vector.broadcast %cst_2 : f32 to vector<1x128xf32>
    %5 = arith.minimumf %4, %3 : vector<1x128xf32>
    %c1 = arith.constant 1 : index
    %c0_3 = arith.constant 0 : index
    %c0_4 = arith.constant 0 : index
    %6 = vector.load %arg1[%c1, %c0_3, %c0_4] : memref<3x1x128xf32, #tpu.memory_space<vmem>>, vector<1x1x128xf32>
    %7 = vector.shape_cast %6 : vector<1x1x128xf32> to vector<1x128xf32>
    %cst_5 = arith.constant -1.000000e+02 : f32
    %cst_6 = arith.constant 1.000000e+02 : f32
    %8 = vector.broadcast %cst_5 : f32 to vector<1x128xf32>
    %9 = arith.maximumf %8, %7 : vector<1x128xf32>
    %10 = vector.broadcast %cst_6 : f32 to vector<1x128xf32>
    %11 = arith.minimumf %10, %9 : vector<1x128xf32>
    %c2 = arith.constant 2 : index
    %c0_7 = arith.constant 0 : index
    %c0_8 = arith.constant 0 : index
    %12 = vector.load %arg1[%c2, %c0_7, %c0_8] : memref<3x1x128xf32, #tpu.memory_space<vmem>>, vector<1x1x128xf32>
    %13 = vector.shape_cast %12 : vector<1x1x128xf32> to vector<1x128xf32>
    %cst_9 = arith.constant -1.000000e+02 : f32
    %cst_10 = arith.constant 1.000000e+02 : f32
    %14 = vector.broadcast %cst_9 : f32 to vector<1x128xf32>
    %15 = arith.maximumf %14, %13 : vector<1x128xf32>
    %16 = vector.broadcast %cst_10 : f32 to vector<1x128xf32>
    %17 = arith.minimumf %16, %15 : vector<1x128xf32>
    %18 = arith.maximumf %5, %11 : vector<1x128xf32>
    %19 = arith.maximumf %18, %17 : vector<1x128xf32>
    %20 = arith.minimumf %5, %11 : vector<1x128xf32>
    %21 = arith.minimumf %20, %17 : vector<1x128xf32>
    %22 = arith.addf %5, %11 : vector<1x128xf32>
    %23 = arith.addf %22, %17 : vector<1x128xf32>
    %24 = arith.subf %23, %19 : vector<1x128xf32>
    %25 = arith.subf %24, %21 : vector<1x128xf32>
    %26 = arith.subf %25, %19 : vector<1x128xf32>
    %27 = math.exp %26 : vector<1x128xf32>
    %cst_11 = arith.constant 1.000000e+00 : f32
    %28 = vector.broadcast %cst_11 : f32 to vector<1x128xf32>
    %29 = arith.addf %28, %27 : vector<1x128xf32>
    %30 = arith.subf %21, %19 : vector<1x128xf32>
    %31 = math.exp %30 : vector<1x128xf32>
    %32 = arith.addf %29, %31 : vector<1x128xf32>
    %33 = math.log %32 : vector<1x128xf32>
    %34 = arith.addf %19, %33 : vector<1x128xf32>
    %c0_12 = arith.constant 0 : index
    %c0_13 = arith.constant 0 : index
    %35 = vector.load %arg2[%c0_12, %c0_13] : memref<1x128xi32, #tpu.memory_space<vmem>>, vector<1x128xi32>
    %c1_i32 = arith.constant 1 : i32
    %36 = vector.broadcast %c1_i32 : i32 to vector<1x128xi32>
    %37 = arith.addi %35, %36 : vector<1x128xi32>
    %c0_i32 = arith.constant 0 : i32
    %38 = vector.broadcast %c0_i32 : i32 to vector<1x128xi32>
    %39 = arith.cmpi eq, %37, %38 : vector<1x128xi32>
    %c1_i32_14 = arith.constant 1 : i32
    %40 = vector.broadcast %c1_i32_14 : i32 to vector<1x128xi32>
    %41 = arith.cmpi eq, %37, %40 : vector<1x128xi32>
    %42 = arith.select %41, %11, %17 : vector<1x128xi1>, vector<1x128xf32>
    %43 = arith.select %39, %5, %42 : vector<1x128xi1>, vector<1x128xf32>
    %44 = arith.subf %34, %43 : vector<1x128xf32>
    %45 = arith.cmpf oge, %5, %11 : vector<1x128xf32>
    %46 = arith.cmpf oge, %5, %17 : vector<1x128xf32>
    %47 = arith.andi %45, %46 : vector<1x128xi1>
    %48 = arith.cmpf oge, %11, %17 : vector<1x128xf32>
    %c1_i32_15 = arith.constant 1 : i32
    %c2_i32 = arith.constant 2 : i32
    %49 = vector.broadcast %c1_i32_15 : i32 to vector<1x128xi32>
    %50 = vector.broadcast %c2_i32 : i32 to vector<1x128xi32>
    %51 = arith.select %48, %49, %50 : vector<1x128xi1>, vector<1x128xi32>
    %c0_i32_16 = arith.constant 0 : i32
    %52 = vector.broadcast %c0_i32_16 : i32 to vector<1x128xi32>
    %53 = arith.select %47, %52, %51 : vector<1x128xi1>, vector<1x128xi32>
    %c1_i32_17 = arith.constant 1 : i32
    %54 = vector.broadcast %c1_i32_17 : i32 to vector<1x128xi32>
    %55 = arith.subi %53, %54 : vector<1x128xi32>
    %c0_18 = arith.constant 0 : index
    %c0_19 = arith.constant 0 : index
    %56 = vector.load %arg4[%c0_18, %c0_19] : memref<1x128xi32, #tpu.memory_space<vmem>>, vector<1x128xi32>
    tpu.vector_store %arg4[%c0_18, %c0_19], %55 {strides = array<i32>} : memref<1x128xi32, #tpu.memory_space<vmem>>, vector<1x128xi32>,
    %c0_i32_20 = arith.constant 0 : i32
    %57 = arith.cmpi eq, %arg0, %c0_i32_20 : i32
    %58 = arith.extui %57 : i1 to i32
    %c0_i32_21 = arith.constant 0 : i32
    %59 = arith.cmpi ne, %58, %c0_i32_21 : i32
    scf.if %59 {
      %63 = tpu.iota {dimensions = array<i32: 0>} : vector<1x128xi32>
      %64 = tpu.iota {dimensions = array<i32: 1>} : vector<1x128xi32>
      %c128_i32 = arith.constant 128 : i32
      %65 = vector.broadcast %c128_i32 : i32 to vector<1x128xi32>
      %66 = arith.muli %63, %65 : vector<1x128xi32>
      %67 = arith.addi %66, %64 : vector<1x128xi32>
      %c8_i32 = arith.constant 8 : i32
      %68 = vector.broadcast %c8_i32 : i32 to vector<1x128xi32>
      %69 = arith.cmpi slt, %67, %68 : vector<1x128xi32>
      %cst_24 = arith.constant 0.000000e+00 : f32
      %70 = vector.broadcast %cst_24 : f32 to vector<1x128xf32>
      %71 = arith.select %69, %44, %70 : vector<1x128xi1>, vector<1x128xf32>
      %cst_25 = arith.constant dense<0.000000e+00> : vector<128xf32>
      %72 = vector.multi_reduction <add>, %71, %cst_25 [0] : vector<1x128xf32> to vector<128xf32>
      %73 = vector.shape_cast %72 : vector<128xf32> to vector<1x128xf32>
      %c0_26 = arith.constant 0 : index
      %c0_27 = arith.constant 0 : index
      %74 = vector.load %arg3[%c0_26, %c0_27] : memref<1x128xf32, #tpu.memory_space<vmem>>, vector<1x128xf32>
      tpu.vector_store %arg3[%c0_26, %c0_27], %73 {strides = array<i32>} : memref<1x128xf32, #tpu.memory_space<vmem>>, vector<1x128xf32>,
    } else {
    }
    %c0_i32_22 = arith.constant 0 : i32
    %60 = arith.cmpi ne, %arg0, %c0_i32_22 : i32
    %61 = arith.extui %60 : i1 to i32
    %c0_i32_23 = arith.constant 0 : i32
    %62 = arith.cmpi ne, %61, %c0_i32_23 : i32
    scf.if %62 {
      %cst_24 = arith.constant dense<0.000000e+00> : vector<128xf32>
      %63 = vector.multi_reduction <add>, %44, %cst_24 [0] : vector<1x128xf32> to vector<128xf32>
      %64 = vector.shape_cast %63 : vector<128xf32> to vector<1x128xf32>
      %c0_25 = arith.constant 0 : index
      %c0_26 = arith.constant 0 : index
      %65 = vector.load %arg3[%c0_25, %c0_26] : memref<1x128xf32, #tpu.memory_space<vmem>>, vector<1x128xf32>
      tpu.vector_store %arg3[%c0_25, %c0_26], %64 {strides = array<i32>} : memref<1x128xf32, #tpu.memory_space<vmem>>, vector<1x128xf32>,
    } else {
    }
    return
  }
  func.func @transform_0(%arg0: i32) -> (i32, i32, i32) {
    %c0_i32 = arith.constant 0 : i32
    %c0_i32_0 = arith.constant 0 : i32
    %c0_i32_1 = arith.constant 0 : i32
    return %c0_i32, %arg0, %c0_i32_0 : i32, i32, i32
  }
  func.func @transform_1(%arg0: i32) -> (i32, i32) {
    %c0_i32 = arith.constant 0 : i32
    %c0_i32_0 = arith.constant 0 : i32
    return %arg0, %c0_i32 : i32, i32
  }
  func.func @transform_2(%arg0: i32) -> (i32, i32) {
    %c0_i32 = arith.constant 0 : i32
    %c0_i32_0 = arith.constant 0 : i32
    return %arg0, %c0_i32 : i32, i32
  }
  func.func @transform_3(%arg0: i32) -> (i32, i32) {
    %c0_i32 = arith.constant 0 : i32
    %c0_i32_0 = arith.constant 0 : i32
    return %arg0, %c0_i32 : i32, i32
  }
}

</mosaic_0001>

<llo_original>
// kernel: entailment_loss.1
$region0: #{entailment_loss.1}
  #allocation0 [shape = 'u32[]', space=smem, size = 0x4, offset = 0x4, fixed_abs, tag = 'smem constant byte address 0x4 - core index']
  #allocation1 [shape = 'u32[144,128]{1,0:T(1,128)}', space=vmem, size = 0x12000, scoped, tag = 'internal scratch']
  %s0 = inlined_call_operand.vmem [shape: f32[3,1,128], index: 0, kind: input, shape index: {}]
  %s1 = inlined_call_operand.vmem [shape: s32[1,128], index: 1, kind: input, shape index: {}]
  %s2 = inlined_call_operand.vmem [shape: f32[1,128], index: 2, kind: output, shape index: {0}]
  %s3 = inlined_call_operand.vmem [shape: s32[1,128], index: 3, kind: output, shape index: {1}]
  %4 = xla_tuple %s2, %s3
  %s5 = sld [smem:[#allocation0]]
  $region34: #{entailment_loss.1} parent=0
    _
  %s7 = ssub.s32 1, %s5
  %s8 = scalar_select 0, %s7, %s5
  // Predicated region
  $region2: #{entailment_loss.1} parent=0 // pred_check
    _
  $region3: #{entailment_loss.1} parent=0 // pred_check_branch
    %10 = sbr.rel (0) target = $region5
  $region4: #{entailment_loss.1} parent=0 // pred_region
    _
  $region5: #{entailment_loss.1} parent=0 // pred_fallthru
    _
  // Predicated region
  $region6: #{entailment_loss.1} parent=0 // pred_check
    _
  $region7: #{entailment_loss.1} parent=0 // pred_check_branch
    %12 = sbr.rel (0) target = $region9
  $region8: #{entailment_loss.1} parent=0 // pred_region
    _
  $region9: #{entailment_loss.1} parent=0 // pred_fallthru
    _
  %v13 = vld [vmem:[%s0] sm:$0x1]
  %v14 = vmax.f32 %v13, -100.0
  %v15 = vmin.f32 %v14, 100.0
  %s16 = scalar_lea.vmem %s0, 1
  %v17 = vld [vmem:[%s16] sm:$0x1]
  %v18 = vmax.f32 %v17, -100.0
  %v19 = vmin.f32 %v18, 100.0
  %s20 = scalar_lea.vmem %s0, 2
  %v21 = vld [vmem:[%s20] sm:$0x1]
  %v22 = vmax.f32 %v21, -100.0
  %v23 = vmin.f32 %v22, 100.0
  %v24 = vmax.f32 %v15, %v19
  %v25 = vmax.f32 %v24, %v23
  %v26 = vmin.f32 %v15, %v19
  %v27 = vmin.f32 %v26, %v23
  %v28 = vadd.f32 %v15, %v19
  %v29 = vadd.f32 %v28, %v23
  %v30 = vsub.f32 %v29, %v25
  %v31 = vsub.f32 %v30, %v27
  %v32 = vsub.f32 %v31, %v25
  %v33 = vmul.f32 %v32, 1.442695
  %v34 = vpow.pop %v33
  %v35 = vadd.f32 %v34, 1.0
  %v36 = vsub.f32 %v27, %v25
  %v37 = vmul.f32 %v36, 1.442695
  %v38 = vpow.pop %v37
  %v39 = vadd.f32 %v35, %v38
  %v40 = vlog2.pop %v39
  %v41 = vmul.f32 %v40, 0.6931472
  %v42 = vadd.f32 %v25, %v41
  %v43 = vld [vmem:[%s1] sm:$0x1]
  %v44 = vadd.s32 %v43, 1
  %vm45 = vcmp.eq.s32.totalorder %v44, 0
  %vm46 = vcmp.eq.s32.totalorder %v44, 1
  %v47 = vsel %vm46, %v19, %v23
  %v48 = vsel %vm45, %v15, %v47
  %v49 = vsub.f32 %v42, %v48
  %vm50 = vcmp.ge.f32.partialorder %v15, %v19
  %vm51 = vcmp.ge.f32.partialorder %v15, %v23
  %vm52 = vmand %vm50, %vm51
  %vm53 = vcmp.ge.f32.partialorder %v19, %v23
  %v54 = vsel %vm53, 1, 2
  %v55 = vsel %vm52, 0, %v54
  %v56 = vsub.s32 %v55, 1
  %57 = vst [vmem:[%s3] sm:$0x1] %v56
  %p58 = scmp.eq.s32.totalorder 0, 0
  // Predicated region
  $region10: #{entailment_loss.1} parent=0 // pred_check
    %p59 = pneg %p58
  $region11: #{entailment_loss.1} parent=0 // pred_check_branch
    %61 = sbr.rel (%p59) target = $region13
  $region12: #{entailment_loss.1} parent=0 // pred_region
    %v62 = vlaneseq
    %v63 = vshrl.u32 %v62, 7
    %v64 = vlaneseq
    %v65 = vand.u32 %v64, 127
    %v66 = vmul.u32 %v63, 128
    %v67 = vadd.s32 %v66, %v65
    %vm68 = vcmp.lt.s32.totalorder %v67, 8
    %v69 = vsel %vm68, %v49, 0.0
    %v70 = vadd.f32 %v69, 0.0
    %71 = vst [vmem:[%s2] sm:$0x1] %v70
  $region13: #{entailment_loss.1} parent=0 // pred_fallthru
    _
  %p72 = scmp.ne.s32.totalorder 0, 0
  // Predicated region
  $region14: #{entailment_loss.1} parent=0 // pred_check
    %p73 = pneg %p72
  $region15: #{entailment_loss.1} parent=0 // pred_check_branch
    %75 = sbr.rel (%p73) target = $region17
  $region16: #{entailment_loss.1} parent=0 // pred_region
    %v76 = vadd.f32 %v49, 0.0
    %77 = vst [vmem:[%s2] sm:$0x1] %v76
  $region17: #{entailment_loss.1} parent=0 // pred_fallthru
    _
  // Predicated region
  $region18: #{entailment_loss.1} parent=0 // pred_check
    _
  $region19: #{entailment_loss.1} parent=0 // pred_check_branch
    %79 = sbr.rel (0) target = $region21
  $region20: #{entailment_loss.1} parent=0 // pred_region
    _
  $region21: #{entailment_loss.1} parent=0 // pred_fallthru
    _
  // Predicated region
  $region22: #{entailment_loss.1} parent=0 // pred_check
    _
  $region23: #{entailment_loss.1} parent=0 // pred_check_branch
    %81 = sbr.rel (0) target = $region25
  $region24: #{entailment_loss.1} parent=0 // pred_region
    _
  $region25: #{entailment_loss.1} parent=0 // pred_fallthru
    _
  // Predicated region
  $region26: #{entailment_loss.1} parent=0 // pred_check
    _
  $region27: #{entailment_loss.1} parent=0 // pred_check_branch
    %83 = sbr.rel (0) target = $region29
  $region28: #{entailment_loss.1} parent=0 // pred_region
    _
  $region29: #{entailment_loss.1} parent=0 // pred_fallthru
    _
  // Predicated region
  $region30: #{entailment_loss.1} parent=0 // pred_check
    _
  $region31: #{entailment_loss.1} parent=0 // pred_check_branch
    %85 = sbr.rel (0) target = $region33
  $region32: #{entailment_loss.1} parent=0 // pred_region
    _
  $region33: #{entailment_loss.1} parent=0 // pred_fallthru
    _

</llo_original>
